<compile_context>
chip_gen: v7x
topology: tpu7x:2x2x1
jax: 0.10.0
libtpu: 0.0.40
codegen_flags: <defaults>
</compile_context>

<pallas_src>
import functools

import jax
import jax.numpy as jnp
from jax.experimental import pallas as pl
from jax.experimental.pallas import tpu as pltpu


# ---------------------------------------------------------------------------
# Kernels
# ---------------------------------------------------------------------------
def _kernel_vector_head(m12_ref, w12_ref, b1_ref, whr_ref, bh_ref, out_ref):
    """Fused hidden matmul + ReLU, then hiddim->1 head as a VPU/XLU reduce."""
    # Hidden layer: one fused MXU matmul over K = m1dim + m2dim, f32 accumulate.
    h = jnp.dot(m12_ref[...], w12_ref[...], preferred_element_type=jnp.float32)
    h = jnp.maximum(h + b1_ref[...], 0.0)          # single bias add + ReLU
    # Head (hiddim -> 1): lane multiply + cross-lane sum (free VALU/XLU slots,
    # avoids an N=1 systolic-array pass).
    y = jnp.sum(h * whr_ref[...], axis=-1, keepdims=True)
    out_ref[...] = (y + bh_ref[...]).astype(out_ref.dtype)


def _kernel_mxu_head(m12_ref, w12_ref, b1_ref, wh_ref, bh_ref, out_ref):
    """General head path for ydim > 1 (MXU matmul)."""
    h = jnp.dot(m12_ref[...], w12_ref[...], preferred_element_type=jnp.float32)
    h = jnp.maximum(h + b1_ref[...], 0.0)
    y = jnp.dot(h, wh_ref[...], preferred_element_type=jnp.float32)
    out_ref[...] = (y + bh_ref[...]).astype(out_ref.dtype)


# ---------------------------------------------------------------------------
# Wrapper
# ---------------------------------------------------------------------------
@functools.partial(jax.jit, static_argnames=("block_batch", "use_bf16"))
def deep_classifier_forward(m1, m2, params, *, block_batch=None, use_bf16=False):
    """params = dict(w1, b1, w2, wh, bh); weights pre-transposed to (in, out)."""
    w1, b1, w2, wh, bh = (params["w1"], params["b1"], params["w2"],
                          params["wh"], params["bh"])
    batch, m1dim = m1.shape
    m2dim = m2.shape[1]
    hiddim = w1.shape[1]
    ydim = wh.shape[1]
    kdim = m1dim + m2dim

    # --- fuse the two hidden matmuls: m1||m2 and [w1; w2] -------------------
    m12 = jnp.concatenate([m1, m2], axis=1)            # (batch, kdim)
    w12 = jnp.concatenate([w1, w2], axis=0)            # (kdim, hiddim)

    compute_dtype = jnp.bfloat16 if use_bf16 else jnp.float32
    m12 = m12.astype(compute_dtype)
    w12 = w12.astype(compute_dtype)
    b1 = b1.astype(jnp.float32)
    bh = bh.astype(jnp.float32)

    # --- batch tiling -------------------------------------------------------
    if block_batch is None:
        block_batch = min(batch, 512)
    tb = min(int(block_batch), batch)
    if tb != batch:
        tb = max(8, (tb // 8) * 8)                     # (8,128) sublane rule
    grid = (pl.cdiv(batch, tb),)

    # --- VMEM budget (sized against v7x's 64 MiB part) ----------------------
    in_bytes = jnp.dtype(compute_dtype).itemsize
    resident = kdim * hiddim * in_bytes + 2 * hiddim * 4 + 2 * ydim * 4
    per_step = tb * kdim * in_bytes + tb * ydim * 4
    hidden = tb * hiddim * 4
    vmem_needed = 2 * per_step + 2 * resident + hidden          # double-buffered
    vmem_limit = int(min(max(4 * vmem_needed, 8 << 20), 48 << 20))

    # --- specs ---------------------------------------------------------------
    act_spec = pl.BlockSpec((tb, kdim), lambda i: (i, 0))
    w12_spec = pl.BlockSpec((kdim, hiddim), lambda i: (0, 0))   # VMEM-resident
    b1_spec = pl.BlockSpec((1, hiddim), lambda i: (0, 0))
    bh_spec = pl.BlockSpec((1, ydim), lambda i: (0, 0))
    out_spec = pl.BlockSpec((tb, ydim), lambda i: (i, 0))

    if ydim == 1:
        kernel = _kernel_vector_head
        head_w = wh.astype(jnp.float32).reshape(1, hiddim)      # row for VPU reduce
        head_spec = pl.BlockSpec((1, hiddim), lambda i: (0, 0))
    else:
        kernel = _kernel_mxu_head
        head_w = wh.astype(compute_dtype)                       # (hiddim, ydim)
        head_spec = pl.BlockSpec((hiddim, ydim), lambda i: (0, 0))

    return pl.pallas_call(
        kernel,
        out_shape=jax.ShapeDtypeStruct((batch, ydim), jnp.float32),
        grid_spec=pl.GridSpec(
            grid=grid,
            in_specs=[act_spec, w12_spec, b1_spec, head_spec, bh_spec],
            out_specs=out_spec,
        ),
        compiler_params=pltpu.CompilerParams(
            dimension_semantics=("parallel",),       # batch tiles independent; uses both TCs on v7x
            vmem_limit_bytes=vmem_limit,
        ),
    )(m12, w12, b1, head_w, bh)


# ---------------------------------------------------------------------------
# Params / reference
# ---------------------------------------------------------------------------
def init_params(key, m1dim, m2dim, hiddim, ydim=1):
    """Deterministic synthetic parameters (PyTorch Linear shapes, pre-transposed)."""
    ks = jax.random.split(key, 5)
    # torch.nn.Linear(in, out).weight is (out, in); store transposed (in, out).
    w1 = jax.random.normal(ks[0], (m1dim, hiddim), jnp.float32) * 0.1
    b1 = jax.random.normal(ks[1], (1, hiddim), jnp.float32) * 0.1
    w2 = jax.random.normal(ks[2], (m2dim, hiddim), jnp.float32) * 0.1
    wh = jax.random.normal(ks[3], (hiddim, ydim), jnp.float32) * 0.1
    bh = jax.random.normal(ks[4], (1, ydim), jnp.float32) * 0.1
    return {"w1": w1, "b1": b1, "w2": w2, "wh": wh, "bh": bh}


def reference_forward(m1, m2, p):
    h = m1 @ p["w1"] + m2 @ p["w2"] + p["b1"]
    h = jnp.maximum(h, 0.0)
    return h @ p["wh"] + p["bh"]


# ---------------------------------------------------------------------------
# Self-test
# ---------------------------------------------------------------------------
if __name__ == "__main__":
    key = jax.random.PRNGKey(0)
    k_m1, k_m2, k_p = jax.random.split(key, 3)

    batch, m1dim, m2dim, hiddim, ydim = 256, 16, 24, 32, 1
    m1 = jax.random.normal(k_m1, (batch, m1dim), jnp.float32)
    m2 = jax.random.normal(k_m2, (batch, m2dim), jnp.float32)
    params = init_params(k_p, m1dim, m2dim, hiddim, ydim)

    ref = reference_forward(m1, m2, params)

    # f32 path (tight tolerance), 2-step batch-tiled grid.
    out = deep_classifier_forward(m1, m2, params, block_batch=128)
    out = jax.block_until_ready(out)
    assert out.shape == (batch, ydim)
    assert jnp.allclose(out, ref, atol=1e-5, rtol=1e-5), "f32 mismatch vs reference"

    # bf16 input/weight path (f32 accumulation) — looser tolerance.
    out_bf16 = deep_classifier_forward(m1, m2, params, block_batch=128, use_bf16=True)
    out_bf16 = jax.block_until_ready(out_bf16)
    assert out_bf16.shape == (batch, ydim)
    assert jnp.allclose(out_bf16, ref, atol=1e-1, rtol=1e-1), "bf16 mismatch vs reference"

    print("KERNEL_OK")
</pallas_src>

<mosaic_0001>
module attributes {stable_mosaic.version = 11 : i64} {
  func.func @_kernel_vector_head(%arg0: i32, %arg1: memref<128x40xf32, #tpu.memory_space<vmem>>, %arg2: memref<40x32xf32, #tpu.memory_space<vmem>>, %arg3: memref<1x32xf32, #tpu.memory_space<vmem>>, %arg4: memref<1x32xf32, #tpu.memory_space<vmem>>, %arg5: memref<1x1xf32, #tpu.memory_space<vmem>>, %arg6: memref<128x1xf32, #tpu.memory_space<vmem>>) attributes {dimension_semantics = [#tpu.dimension_semantics<parallel>], iteration_bounds = array<i64: 2>, scalar_prefetch = 0 : i64, scratch_operands = 0 : i64, tpu.core_type = #tpu.core_type<tc>, window_params = [{transform_indices = @transform_0, window_bounds = array<i64: 128, 40>}, {pipeline_mode = #tpu.pipeline_mode<synchronous>, transform_indices = @transform_1, window_bounds = array<i64: 40, 32>}, {pipeline_mode = #tpu.pipeline_mode<synchronous>, transform_indices = @transform_2, window_bounds = array<i64: 1, 32>}, {pipeline_mode = #tpu.pipeline_mode<synchronous>, transform_indices = @transform_3, window_bounds = array<i64: 1, 32>}, {pipeline_mode = #tpu.pipeline_mode<synchronous>, transform_indices = @transform_4, window_bounds = array<i64: 1, 1>}, {transform_indices = @transform_5, window_bounds = array<i64: 128, 1>}]} {
    %c0 = arith.constant 0 : index
    %c0_0 = arith.constant 0 : index
    %0 = vector.load %arg1[%c0, %c0_0] : memref<128x40xf32, #tpu.memory_space<vmem>>, vector<128x40xf32>
    %c0_1 = arith.constant 0 : index
    %c0_2 = arith.constant 0 : index
    %1 = vector.load %arg2[%c0_1, %c0_2] : memref<40x32xf32, #tpu.memory_space<vmem>>, vector<40x32xf32>
    %cst = arith.constant dense<0.000000e+00> : vector<128x32xf32>
    %2 = tpu.matmul %0, %1, %cst {dimension_numbers = #tpu.dot_dimension_numbers<[1], [0], [0], [1], [0, 0, 1, 1], [], []>} : vector<128x40xf32>, vector<40x32xf32>, vector<128x32xf32> -> vector<128x32xf32>
    %c0_3 = arith.constant 0 : index
    %c0_4 = arith.constant 0 : index
    %3 = vector.load %arg3[%c0_3, %c0_4] : memref<1x32xf32, #tpu.memory_space<vmem>>, vector<1x32xf32>
    %4 = vector.broadcast %3 : vector<1x32xf32> to vector<128x32xf32>
    %5 = arith.addf %2, %4 : vector<128x32xf32>
    %cst_5 = arith.constant 0.000000e+00 : f32
    %6 = vector.broadcast %cst_5 : f32 to vector<128x32xf32>
    %7 = arith.maximumf %5, %6 : vector<128x32xf32>
    %c0_6 = arith.constant 0 : index
    %c0_7 = arith.constant 0 : index
    %8 = vector.load %arg4[%c0_6, %c0_7] : memref<1x32xf32, #tpu.memory_space<vmem>>, vector<1x32xf32>
    %9 = vector.broadcast %8 : vector<1x32xf32> to vector<128x32xf32>
    %10 = arith.mulf %7, %9 : vector<128x32xf32>
    %cst_8 = arith.constant dense<0.000000e+00> : vector<128xf32>
    %11 = vector.multi_reduction <add>, %10, %cst_8 [1] : vector<128x32xf32> to vector<128xf32>
    %12 = vector.shape_cast %11 : vector<128xf32> to vector<128x1xf32>
    %c0_9 = arith.constant 0 : index
    %c0_10 = arith.constant 0 : index
    %13 = vector.load %arg5[%c0_9, %c0_10] : memref<1x1xf32, #tpu.memory_space<vmem>>, vector<1x1xf32>
    %14 = vector.broadcast %13 : vector<1x1xf32> to vector<128x1xf32>
    %15 = arith.addf %12, %14 : vector<128x1xf32>
    %c0_11 = arith.constant 0 : index
    %c0_12 = arith.constant 0 : index
    %16 = vector.load %arg6[%c0_11, %c0_12] : memref<128x1xf32, #tpu.memory_space<vmem>>, vector<128x1xf32>
    tpu.vector_store %arg6[%c0_11, %c0_12], %15 {strides = array<i32>} : memref<128x1xf32, #tpu.memory_space<vmem>>, vector<128x1xf32>,
    return
  }
  func.func @transform_0(%arg0: i32) -> (i32, i32) {
    %c0_i32 = arith.constant 0 : i32
    %c0_i32_0 = arith.constant 0 : i32
    return %arg0, %c0_i32 : i32, i32
  }
  func.func @transform_1(%arg0: i32) -> (i32, i32) {
    %c0_i32 = arith.constant 0 : i32
    %c0_i32_0 = arith.constant 0 : i32
    %c0_i32_1 = arith.constant 0 : i32
    return %c0_i32, %c0_i32_0 : i32, i32
  }
  func.func @transform_2(%arg0: i32) -> (i32, i32) {
    %c0_i32 = arith.constant 0 : i32
    %c0_i32_0 = arith.constant 0 : i32
    %c0_i32_1 = arith.constant 0 : i32
    return %c0_i32, %c0_i32_0 : i32, i32
  }
  func.func @transform_3(%arg0: i32) -> (i32, i32) {
    %c0_i32 = arith.constant 0 : i32
    %c0_i32_0 = arith.constant 0 : i32
    %c0_i32_1 = arith.constant 0 : i32
    return %c0_i32, %c0_i32_0 : i32, i32
  }
  func.func @transform_4(%arg0: i32) -> (i32, i32) {
    %c0_i32 = arith.constant 0 : i32
    %c0_i32_0 = arith.constant 0 : i32
    %c0_i32_1 = arith.constant 0 : i32
    return %c0_i32, %c0_i32_0 : i32, i32
  }
  func.func @transform_5(%arg0: i32) -> (i32, i32) {
    %c0_i32 = arith.constant 0 : i32
    %c0_i32_0 = arith.constant 0 : i32
    return %arg0, %c0_i32 : i32, i32
  }
}

</mosaic_0001>

<llo_original>
// kernel: deep_classifier_forward.1
$region0: #{deep_classifier_forward.1}
  #allocation0 [shape = 'u32[]', space=smem, size = 0x4, offset = 0x4, fixed_abs, tag = 'smem constant byte address 0x4 - core index']
  #allocation1 [shape = 'u32[144,128]{1,0:T(1,128)}', space=vmem, size = 0x12000, scoped, tag = 'internal scratch']
  #allocation2 [shape = 'f32[1,1]{1,0:T(1,128)S(1)}', space=vmem, size = 0x200, scoped, tag = 'scoped memory for deep_classifier_forward.1']
  %s0 = inlined_call_operand.vmem [shape: f32[256,40], index: 0, kind: input, shape index: {}]
  %s1 = inlined_call_operand.vmem [shape: f32[40,32], index: 1, kind: input, shape index: {}]
  %s2 = inlined_call_operand.vmem [shape: f32[1,32], index: 2, kind: input, shape index: {}]
  %s3 = inlined_call_operand.vmem [shape: f32[1,32], index: 3, kind: input, shape index: {}]
  %s4 = inlined_call_operand.<no memory space> [shape: f32[1,1], index: 4, kind: input, shape index: {}]
  %s5 = inlined_call_operand.vmem [shape: f32[256,1], index: 5, kind: output, shape index: {}]
  %s6 = sld [smem:[#allocation0]]
  $region53: #{deep_classifier_forward.1} parent=0
    _
  %s8 = ssub.s32 1, %s6
  %s9 = scalar_select 0, %s8, %s6
  %v10 = vstv %s4
  %11 = vst [vmem:[#allocation2] sm:$0x1] %v10
  loop: start=0, step=1, limit=4
  $region2: #{deep_classifier_forward.1} parent=0 // loop_pre_header
    _
  $region3: #{deep_classifier_forward.1} parent=0 // loop_header
    %s13 = sphi 0, %s17
    %p14 = scmp.ge.s32.totalorder %s13, 4
    %s23 = sphi 0, %s25
    %s26 = sphi 0, %s23
    %s27 = sphi 0, %s26
    %s43 = sphi 0, %s27
    %s47 = sphi 0, %s47
    %s49 = sphi 0, %s47
    %s50 = sphi 0, %s49
    %s64 = sphi 0, %s50
    %s68 = sphi 0, %s68
    %s70 = sphi 0, %s68
    %s71 = sphi 0, %s70
    %s85 = sphi 0, %s71
    %s89 = sphi 0, %s89
    %s91 = sphi 0, %s89
    %s92 = sphi 0, %s91
    %s106 = sphi 0, %s92
    %s110 = sphi 0, %s110
    %s112 = sphi 0, %s110
    %s113 = sphi 0, %s112
    %s127 = sphi 0, %s113
    %s133 = sphi 0, %s135
    %s136 = sphi 0, %s133
    %s137 = sphi 0, %s136
    %s153 = sphi 0, %s137
  $region4: #{deep_classifier_forward.1} parent=0 // loop_header_branch
    %16 = sbr.rel (%p14) target = $region8
  $region5: #{deep_classifier_forward.1} parent=0 // loop_body
    %s18 = ssub.s32 %s13, 1
    %s19 = ssub.s32 %s13, 2
    %s20 = sadd.s32 %s13, 1
    %s21 = ssub.s32 %s13, %s20
    %p22 = scmp.eq.s32.totalorder %s21, 0
    %s24 = sadd.s32 %s23, 1
    %s25 = scalar_select %p22, %s23, %s24
    %p28 = pneg %p22
    %p29 = scmp.eq.s32.totalorder %s13, 1
    %p30 = por %p28, %p29
    %p31 = scmp.ne.s32.totalorder %s23, %s26
    %p32 = scmp.eq.s32.totalorder %s13, 0
    %p33 = por %p31, %p32
    %p34 = scmp.ne.s32.totalorder %s23, %s26
    %p35 = scmp.eq.s32.totalorder %s18, 1
    %p36 = por %p34, %p35
    %p37 = scmp.ne.s32.totalorder %s26, %s27
    %p38 = scmp.eq.s32.totalorder %s18, 0
    %p39 = por %p37, %p38
    %p40 = scmp.ne.s32.totalorder %s26, %s27
    %p41 = scmp.eq.s32.totalorder %s19, 1
    %p42 = por %p40, %p41
    %p44 = scmp.ne.s32.totalorder %s27, %s43
    %p45 = scmp.eq.s32.totalorder %s19, 0
    %p46 = por %p44, %p45
    %s48 = sadd.s32 %s47, 1
    %p51 = scmp.eq.s32.totalorder %s13, 1
    %p52 = scmp.ne.s32.totalorder %s47, %s49
    %p53 = scmp.eq.s32.totalorder %s13, 0
    %p54 = por %p52, %p53
    %p55 = scmp.ne.s32.totalorder %s47, %s49
    %p56 = scmp.eq.s32.totalorder %s18, 1
    %p57 = por %p55, %p56
    %p58 = scmp.ne.s32.totalorder %s49, %s50
    %p59 = scmp.eq.s32.totalorder %s18, 0
    %p60 = por %p58, %p59
    %p61 = scmp.ne.s32.totalorder %s49, %s50
    %p62 = scmp.eq.s32.totalorder %s19, 1
    %p63 = por %p61, %p62
    %p65 = scmp.ne.s32.totalorder %s50, %s64
    %p66 = scmp.eq.s32.totalorder %s19, 0
    %p67 = por %p65, %p66
    %s69 = sadd.s32 %s68, 1
    %p72 = scmp.eq.s32.totalorder %s13, 1
    %p73 = scmp.ne.s32.totalorder %s68, %s70
    %p74 = scmp.eq.s32.totalorder %s13, 0
    %p75 = por %p73, %p74
    %p76 = scmp.ne.s32.totalorder %s68, %s70
    %p77 = scmp.eq.s32.totalorder %s18, 1
    %p78 = por %p76, %p77
    %p79 = scmp.ne.s32.totalorder %s70, %s71
    %p80 = scmp.eq.s32.totalorder %s18, 0
    %p81 = por %p79, %p80
    %p82 = scmp.ne.s32.totalorder %s70, %s71
    %p83 = scmp.eq.s32.totalorder %s19, 1
    %p84 = por %p82, %p83
    %p86 = scmp.ne.s32.totalorder %s71, %s85
    %p87 = scmp.eq.s32.totalorder %s19, 0
    %p88 = por %p86, %p87
    %s90 = sadd.s32 %s89, 1
    %p93 = scmp.eq.s32.totalorder %s13, 1
    %p94 = scmp.ne.s32.totalorder %s89, %s91
    %p95 = scmp.eq.s32.totalorder %s13, 0
    %p96 = por %p94, %p95
    %p97 = scmp.ne.s32.totalorder %s89, %s91
    %p98 = scmp.eq.s32.totalorder %s18, 1
    %p99 = por %p97, %p98
    %p100 = scmp.ne.s32.totalorder %s91, %s92
    %p101 = scmp.eq.s32.totalorder %s18, 0
    %p102 = por %p100, %p101
    %p103 = scmp.ne.s32.totalorder %s91, %s92
    %p104 = scmp.eq.s32.totalorder %s19, 1
    %p105 = por %p103, %p104
    %p107 = scmp.ne.s32.totalorder %s92, %s106
    %p108 = scmp.eq.s32.totalorder %s19, 0
    %p109 = por %p107, %p108
    %s111 = sadd.s32 %s110, 1
    %p114 = scmp.eq.s32.totalorder %s13, 1
    %p115 = scmp.ne.s32.totalorder %s110, %s112
    %p116 = scmp.eq.s32.totalorder %s13, 0
    %p117 = por %p115, %p116
    %p118 = scmp.ne.s32.totalorder %s110, %s112
    %p119 = scmp.eq.s32.totalorder %s18, 1
    %p120 = por %p118, %p119
    %p121 = scmp.ne.s32.totalorder %s112, %s113
    %p122 = scmp.eq.s32.totalorder %s18, 0
    %p123 = por %p121, %p122
    %p124 = scmp.ne.s32.totalorder %s112, %s113
    %p125 = scmp.eq.s32.totalorder %s19, 1
    %p126 = por %p124, %p125
    %p128 = scmp.ne.s32.totalorder %s113, %s127
    %p129 = scmp.eq.s32.totalorder %s19, 0
    %p130 = por %p128, %p129
    %s131 = ssub.s32 %s13, %s20
    %p132 = scmp.eq.s32.totalorder %s131, 0
    %s134 = sadd.s32 %s133, 1
    %s135 = scalar_select %p132, %s133, %s134
    %p138 = pneg %p132
    %p139 = scmp.eq.s32.totalorder %s13, 1
    %p140 = por %p138, %p139
    %p141 = scmp.ne.s32.totalorder %s133, %s136
    %p142 = scmp.eq.s32.totalorder %s13, 0
    %p143 = por %p141, %p142
    %p144 = scmp.ne.s32.totalorder %s133, %s136
    %p145 = scmp.eq.s32.totalorder %s18, 1
    %p146 = por %p144, %p145
    %p147 = scmp.ne.s32.totalorder %s136, %s137
    %p148 = scmp.eq.s32.totalorder %s18, 0
    %p149 = por %p147, %p148
    %p150 = scmp.ne.s32.totalorder %s136, %s137
    %p151 = scmp.eq.s32.totalorder %s19, 1
    %p152 = por %p150, %p151
    %p154 = scmp.ne.s32.totalorder %s137, %s153
    %p155 = scmp.eq.s32.totalorder %s19, 0
    %p156 = por %p154, %p155
    %p157 = scmp.le.s32.totalorder 1, %s13
    %p158 = scmp.lt.s32.totalorder %s13, 3
    %p159 = pnand %p157, %p158
    %p160 = pneg %p159
    // Predicated region
    $region9: #{deep_classifier_forward.1} parent=5 // pred_check
      _
    $region10: #{deep_classifier_forward.1} parent=5 // pred_check_branch
      %162 = sbr.rel (%p159) target = $region12
    $region11: #{deep_classifier_forward.1} parent=5 // pred_region
      %s163 = ssub.s32 %s13, 1
      // Predicated region
      $region13: #{deep_classifier_forward.1} parent=11 // pred_check
        %p164 = pneg %p60
      $region14: #{deep_classifier_forward.1} parent=11 // pred_check_branch
        %166 = sbr.rel (%p164) target = $region16
      $region15: #{deep_classifier_forward.1} parent=11 // pred_region
        _
      $region16: #{deep_classifier_forward.1} parent=11 // pred_fallthru
        _
      // Predicated region
      $region17: #{deep_classifier_forward.1} parent=11 // pred_check
        %p167 = pneg %p81
      $region18: #{deep_classifier_forward.1} parent=11 // pred_check_branch
        %169 = sbr.rel (%p167) target = $region20
      $region19: #{deep_classifier_forward.1} parent=11 // pred_region
        _
      $region20: #{deep_classifier_forward.1} parent=11 // pred_fallthru
        _
      // Predicated region
      $region21: #{deep_classifier_forward.1} parent=11 // pred_check
        %p170 = pneg %p102
      $region22: #{deep_classifier_forward.1} parent=11 // pred_check_branch
        %172 = sbr.rel (%p170) target = $region24
      $region23: #{deep_classifier_forward.1} parent=11 // pred_region
        _
      $region24: #{deep_classifier_forward.1} parent=11 // pred_fallthru
        _
      // Predicated region
      $region25: #{deep_classifier_forward.1} parent=11 // pred_check
        %p173 = pneg %p123
      $region26: #{deep_classifier_forward.1} parent=11 // pred_check_branch
        %175 = sbr.rel (%p173) target = $region28
      $region27: #{deep_classifier_forward.1} parent=11 // pred_region
        _
      $region28: #{deep_classifier_forward.1} parent=11 // pred_fallthru
        _
    $region12: #{deep_classifier_forward.1} parent=5 // pred_fallthru
      _
    %p176 = scmp.lt.s32.totalorder %s13, 2
    // Predicated region
    $region29: #{deep_classifier_forward.1} parent=5 // pred_check
      %p177 = pneg %p176
    $region30: #{deep_classifier_forward.1} parent=5 // pred_check_branch
      %179 = sbr.rel (%p177) target = $region32
    $region31: #{deep_classifier_forward.1} parent=5 // pred_region
      // Predicated region
      $region33: #{deep_classifier_forward.1} parent=31 // pred_check
        %p180 = pneg %p33
      $region34: #{deep_classifier_forward.1} parent=31 // pred_check_branch
        %182 = sbr.rel (%p180) target = $region36
      $region35: #{deep_classifier_forward.1} parent=31 // pred_region
        %s183 = smul.u32 16, %s13
        %p184 = scmp.lt.s32.totalorder %s183, 31
        %s185 = scalar_select %p184, %s183, 31
        %s186 = smul.addr %s185, 8
        %s187 = scalar_lea.vmem %s0, %s186
        %s188 = smul.u32 16, %s13
      $region36: #{deep_classifier_forward.1} parent=31 // pred_fallthru
        _
    $region32: #{deep_classifier_forward.1} parent=5 // pred_fallthru
      _
    %p189 = scmp.le.s32.totalorder 1, %s13
    %p190 = scmp.lt.s32.totalorder %s13, 3
    %p191 = pnand %p189, %p190
    %p192 = pneg %p191
    // Predicated region
    $region37: #{deep_classifier_forward.1} parent=5 // pred_check
      _
    $region38: #{deep_classifier_forward.1} parent=5 // pred_check_branch
      %194 = sbr.rel (%p191) target = $region40
    $region39: #{deep_classifier_forward.1} parent=5 // pred_region
      %s195 = ssub.s32 %s13, 1
      %s196 = smul.u32 16, %s18
      %p197 = scmp.lt.s32.totalorder %s196, 31
      %s198 = scalar_select %p197, %s196, 31
      %s199 = smul.addr %s198, 8
      %s200 = scalar_lea.vmem %s0, %s199
      %p201 = pneg %p39
      %p202 = pneg %p36
      %p203 = pneg %p60
      %p204 = pneg %p57
      %p205 = pneg %p81
      %p206 = pneg %p78
      %p207 = pneg %p102
      %p208 = pneg %p99
      %p209 = pneg %p123
      %p210 = pneg %p120
      %p211 = pneg %p149
      %p212 = pneg %p146
      %s213 = smul.u32 16, %s18
      %p214 = scmp.lt.s32.totalorder %s213, 31
      %s215 = scalar_select %p214, %s213, 31
      %s216 = smul.addr %s215, 8
      %s217 = scalar_lea.vmem %s5, %s216
      %s218 = smul.u32 16, %s18
      %p219 = scmp.lt.s32.totalorder %s218, 31
      %s220 = scalar_select %p219, %s218, 31
      %s221 = smul.addr %s220, 8
      %s222 = scalar_lea.vmem %s0, %s221
      %s223 = smul.u32 16, %s18
      %s224 = smul.u32 16, %s18
      %p225 = scmp.lt.s32.totalorder %s224, 31
      %s226 = scalar_select %p225, %s224, 31
      %s227 = smul.addr %s226, 8
      %s228 = scalar_lea.vmem %s5, %s227
      %s229 = smul.u32 16, %s18
      %v230 = vld [vmem:[%s222] sm:$0xff]
      %v231 = vld [vmem:[%s222 + $0x8] sm:$0xff]
      %v232 = vld [vmem:[%s222 + $0x10] sm:$0xff]
      %v233 = vld [vmem:[%s222 + $0x18] sm:$0xff]
      %v234 = vld [vmem:[%s222 + $0x20] sm:$0xff]
      %v235 = vld [vmem:[%s222 + $0x28] sm:$0xff]
      %v236 = vld [vmem:[%s222 + $0x30] sm:$0xff]
      %v237 = vld [vmem:[%s222 + $0x38] sm:$0xff]
      %v238 = vld [vmem:[%s222 + $0x40] sm:$0xff]
      %v239 = vld [vmem:[%s222 + $0x48] sm:$0xff]
      %v240 = vld [vmem:[%s222 + $0x50] sm:$0xff]
      %v241 = vld [vmem:[%s222 + $0x58] sm:$0xff]
      %v242 = vld [vmem:[%s222 + $0x60] sm:$0xff]
      %v243 = vld [vmem:[%s222 + $0x68] sm:$0xff]
      %v244 = vld [vmem:[%s222 + $0x70] sm:$0xff]
      %v245 = vld [vmem:[%s222 + $0x78] sm:$0xff]
      %v246 = vld [vmem:[%s1] sm:$0xff]
      %v247 = vld [vmem:[%s1 + $0x8] sm:$0xff]
      %v248 = vld [vmem:[%s1 + $0x10] sm:$0xff]
      %v249 = vld [vmem:[%s1 + $0x18] sm:$0xff]
      %v250 = vld [vmem:[%s1 + $0x20] sm:$0xff]
      %v251 = vld [vmem:[%s2] sm:$0x1]
      %v253 = vlaneseq
      %v254 = vshrl.u32 %v253, 7
      %v255 = vsub.s32 0, %v254
      %v256 = vrot.slane %v251, %v255
      %vm258 = vcmask 326656
      %v260 = vsel %vm258, %v230, 0
      %v263 = vsel %vm258, %v231, 0
      %v266 = vsel %vm258, %v232, 0
      %v269 = vsel %vm258, %v233, 0
      %v272 = vsel %vm258, %v234, 0
      %v275 = vsel %vm258, %v235, 0
      %v278 = vsel %vm258, %v236, 0
      %v281 = vsel %vm258, %v237, 0
      %v284 = vsel %vm258, %v238, 0
      %v287 = vsel %vm258, %v239, 0
      %v290 = vsel %vm258, %v240, 0
      %v293 = vsel %vm258, %v241, 0
      %v296 = vsel %vm258, %v242, 0
      %v299 = vsel %vm258, %v243, 0
      %v302 = vsel %vm258, %v244, 0
      %v305 = vsel %vm258, %v245, 0
      %307 = vmatprep.subr.mxu0 0.0
      %308 = vmatpush1.msra.mxu0 %v246
      %309 = vmatprep.subr.mxu0 0.0
      %310 = vmatpush1.msra.mxu0 %v247
      %311 = vmatprep.subr.mxu0 0.0
      %312 = vmatpush1.msra.mxu0 %v248
      %313 = vmatprep.subr.mxu0 0.0
      %314 = vmatpush1.msra.mxu0 %v249
      %315 = vmatprep.subr.mxu0 0.0
      %316 = vmatpush1.msra.mxu0 %v250
      %317 = vmatprep.subr.mxu0 0.0
      %318 = vmatpush1.msra.mxu0 0.0
      %319 = vmatprep.subr.mxu0 0.0
      %320 = vmatpush1.msra.mxu0 0.0
      %321 = vmatprep.subr.mxu0 0.0
      %322 = vmatpush1.msra.mxu0 0.0
      %323 = vmatprep.subr.mxu0 0.0
      %324 = vmatpush1.msra.mxu0 0.0
      %325 = vmatprep.subr.mxu0 0.0
      %326 = vmatpush1.msra.mxu0 0.0
      %327 = vmatprep.subr.mxu0 0.0
      %328 = vmatpush1.msra.mxu0 0.0
      %329 = vmatprep.subr.mxu0 0.0
      %330 = vmatpush1.msra.mxu0 0.0
      %331 = vmatprep.subr.mxu0 0.0
      %332 = vmatpush1.msra.mxu0 0.0
      %333 = vmatprep.subr.mxu0 0.0
      %334 = vmatpush1.msra.mxu0 0.0
      %335 = vmatprep.subr.mxu0 0.0
      %336 = vmatpush1.msra.mxu0 0.0
      %337 = vmatprep.subr.mxu0 0.0
      %338 = vmatpush1.msra.mxu0 0.0
      %339 = vmatprep.subr.mxu0 0.0
      %340 = vmatpush1.msra.mxu0 0.0
      %341 = vmatprep.subr.mxu0 0.0
      %342 = vmatpush1.msra.mxu0 0.0
      %343 = vmatprep.subr.mxu0 0.0
      %344 = vmatpush1.msra.mxu0 0.0
      %345 = vmatprep.subr.mxu0 0.0
      %346 = vmatpush1.msra.mxu0 0.0
      %347 = vmatprep.subr.mxu0 0.0
      %348 = vmatpush1.msra.mxu0 0.0
      %349 = vmatprep.subr.mxu0 0.0
      %350 = vmatpush1.msra.mxu0 0.0
      %351 = vmatprep.subr.mxu0 0.0
      %352 = vmatpush1.msra.mxu0 0.0
      %353 = vmatprep.subr.mxu0 0.0
      %354 = vmatpush1.msra.mxu0 0.0
      %355 = vmatprep.subr.mxu0 0.0
      %356 = vmatpush1.msra.mxu0 0.0
      %357 = vmatprep.subr.mxu0 0.0
      %358 = vmatpush1.msra.mxu0 0.0
      %359 = vmatprep.subr.mxu0 0.0
      %360 = vmatpush1.msra.mxu0 0.0
      %361 = vmatprep.subr.mxu0 0.0
      %362 = vmatpush1.msra.mxu0 0.0
      %363 = vmatprep.subr.mxu0 0.0
      %364 = vmatpush1.msra.mxu0 0.0
      %365 = vmatprep.subr.mxu0 0.0
      %366 = vmatpush1.msra.mxu0 0.0
      %367 = vmatprep.subr.mxu0 0.0
      %368 = vmatpush1.msra.mxu0 0.0
      %369 = vmatprep.subr.mxu0 0.0
      %370 = vmatpush1.msra.mxu0 0.0
      %371 = vmatprep.mubr.f32.mxu0 0.0
      %372 = vmatmul.mubr.f32.gmra.mrb[0].mxu0 %v260
      %v373 = vpop.f32.mrb[0].mxu0
      %v374 = vadd.f32 %v256, %v373
      %v375 = vpop.f32.mrb[0].mxu0
      %376 = vmatprep.mubr.f32.mxu0 0.0
      %377 = vmatmul.mubr.f32.gmra.mrb[0].mxu0 %v263
      %v378 = vpop.f32.mrb[0].mxu0
      %v379 = vadd.f32 %v256, %v378
      %v380 = vpop.f32.mrb[0].mxu0
      %381 = vmatprep.mubr.f32.mxu0 0.0
      %382 = vmatmul.mubr.f32.gmra.mrb[0].mxu0 %v266
      %v383 = vpop.f32.mrb[0].mxu0
      %v384 = vadd.f32 %v256, %v383
      %v385 = vpop.f32.mrb[0].mxu0
      %386 = vmatprep.mubr.f32.mxu0 0.0
      %387 = vmatmul.mubr.f32.gmra.mrb[0].mxu0 %v269
      %v388 = vpop.f32.mrb[0].mxu0
      %v389 = vadd.f32 %v256, %v388
      %v390 = vpop.f32.mrb[0].mxu0
      %391 = vmatprep.mubr.f32.mxu0 0.0
      %392 = vmatmul.mubr.f32.gmra.mrb[0].mxu0 %v272
      %v393 = vpop.f32.mrb[0].mxu0
      %v394 = vadd.f32 %v256, %v393
      %v395 = vpop.f32.mrb[0].mxu0
      %396 = vmatprep.mubr.f32.mxu0 0.0
      %397 = vmatmul.mubr.f32.gmra.mrb[0].mxu0 %v275
      %v398 = vpop.f32.mrb[0].mxu0
      %v399 = vadd.f32 %v256, %v398
      %v400 = vpop.f32.mrb[0].mxu0
      %401 = vmatprep.mubr.f32.mxu0 0.0
      %402 = vmatmul.mubr.f32.gmra.mrb[0].mxu0 %v278
      %v403 = vpop.f32.mrb[0].mxu0
      %v404 = vadd.f32 %v256, %v403
      %v405 = vpop.f32.mrb[0].mxu0
      %406 = vmatprep.mubr.f32.mxu0 0.0
      %407 = vmatmul.mubr.f32.gmra.mrb[0].mxu0 %v281
      %v408 = vpop.f32.mrb[0].mxu0
      %v409 = vadd.f32 %v256, %v408
      %v410 = vpop.f32.mrb[0].mxu0
      %411 = vmatprep.mubr.f32.mxu0 0.0
      %412 = vmatmul.mubr.f32.gmra.mrb[0].mxu0 %v284
      %v413 = vpop.f32.mrb[0].mxu0
      %v414 = vadd.f32 %v256, %v413
      %v415 = vpop.f32.mrb[0].mxu0
      %416 = vmatprep.mubr.f32.mxu0 0.0
      %417 = vmatmul.mubr.f32.gmra.mrb[0].mxu0 %v287
      %v418 = vpop.f32.mrb[0].mxu0
      %v419 = vadd.f32 %v256, %v418
      %v420 = vpop.f32.mrb[0].mxu0
      %421 = vmatprep.mubr.f32.mxu0 0.0
      %422 = vmatmul.mubr.f32.gmra.mrb[0].mxu0 %v290
      %v423 = vpop.f32.mrb[0].mxu0
      %v424 = vadd.f32 %v256, %v423
      %v425 = vpop.f32.mrb[0].mxu0
      %426 = vmatprep.mubr.f32.mxu0 0.0
      %427 = vmatmul.mubr.f32.gmra.mrb[0].mxu0 %v293
      %v428 = vpop.f32.mrb[0].mxu0
      %v429 = vadd.f32 %v256, %v428
      %v430 = vpop.f32.mrb[0].mxu0
      %431 = vmatprep.mubr.f32.mxu0 0.0
      %432 = vmatmul.mubr.f32.gmra.mrb[0].mxu0 %v296
      %v433 = vpop.f32.mrb[0].mxu0
      %v434 = vadd.f32 %v256, %v433
      %v435 = vpop.f32.mrb[0].mxu0
      %436 = vmatprep.mubr.f32.mxu0 0.0
      %437 = vmatmul.mubr.f32.gmra.mrb[0].mxu0 %v299
      %v438 = vpop.f32.mrb[0].mxu0
      %v439 = vadd.f32 %v256, %v438
      %v440 = vpop.f32.mrb[0].mxu0
      %441 = vmatprep.mubr.f32.mxu0 0.0
      %442 = vmatmul.mubr.f32.gmra.mrb[0].mxu0 %v302
      %v443 = vpop.f32.mrb[0].mxu0
      %v444 = vadd.f32 %v256, %v443
      %v445 = vpop.f32.mrb[0].mxu0
      %446 = vmatprep.mubr.f32.mxu0 0.0
      %447 = vmatmul.mubr.f32.gmra.mrb[0].mxu0 %v305
      %v448 = vpop.f32.mrb[0].mxu0
      %v449 = vadd.f32 %v256, %v448
      %v450 = vpop.f32.mrb[0].mxu0
      %451 = vdwg.mxu0
      %v452 = vmax.f32 %v374, 0.0
      %v453 = vmax.f32 %v379, 0.0
      %v454 = vmax.f32 %v384, 0.0
      %v455 = vmax.f32 %v389, 0.0
      %v456 = vmax.f32 %v394, 0.0
      %v457 = vmax.f32 %v399, 0.0
      %v458 = vmax.f32 %v404, 0.0
      %v459 = vmax.f32 %v409, 0.0
      %v460 = vmax.f32 %v414, 0.0
      %v461 = vmax.f32 %v419, 0.0
      %v462 = vmax.f32 %v424, 0.0
      %v463 = vmax.f32 %v429, 0.0
      %v464 = vmax.f32 %v434, 0.0
      %v465 = vmax.f32 %v439, 0.0
      %v466 = vmax.f32 %v444, 0.0
      %v467 = vmax.f32 %v449, 0.0
      %v468 = vld [vmem:[%s3] sm:$0x1]
      %v470 = vlaneseq
      %v471 = vshrl.u32 %v470, 7
      %v472 = vsub.s32 0, %v471
      %v473 = vrot.slane %v468, %v472
      %v475 = vmul.f32 %v452, %v473
      %v476 = vmul.f32 %v453, %v473
      %v477 = vmul.f32 %v454, %v473
      %v478 = vmul.f32 %v455, %v473
      %v479 = vmul.f32 %v456, %v473
      %v480 = vmul.f32 %v457, %v473
      %v481 = vmul.f32 %v458, %v473
      %v482 = vmul.f32 %v459, %v473
      %v483 = vmul.f32 %v460, %v473
      %v484 = vmul.f32 %v461, %v473
      %v485 = vmul.f32 %v462, %v473
      %v486 = vmul.f32 %v463, %v473
      %v487 = vmul.f32 %v464, %v473
      %v488 = vmul.f32 %v465, %v473
      %v489 = vmul.f32 %v466, %v473
      %v490 = vmul.f32 %v467, %v473
      %vm491 = vcmask 261120
      %v492 = vsel %vm491, %v475, 0.0
      %493 = vadd.xlane.f32.xlu0 %v492
      %v494 = vpop.xlane.xlu0 %493
      %v495 = vsel %vm491, %v476, 0.0
      %496 = vadd.xlane.f32.xlu0 %v495
      %v497 = vpop.xlane.xlu0 %496
      %v498 = vsel %vm491, %v477, 0.0
      %499 = vadd.xlane.f32.xlu0 %v498
      %v500 = vpop.xlane.xlu0 %499
      %v501 = vsel %vm491, %v478, 0.0
      %502 = vadd.xlane.f32.xlu0 %v501
      %v503 = vpop.xlane.xlu0 %502
      %v504 = vsel %vm491, %v479, 0.0
      %505 = vadd.xlane.f32.xlu0 %v504
      %v506 = vpop.xlane.xlu0 %505
      %v507 = vsel %vm491, %v480, 0.0
      %508 = vadd.xlane.f32.xlu0 %v507
      %v509 = vpop.xlane.xlu0 %508
      %v510 = vsel %vm491, %v481, 0.0
      %511 = vadd.xlane.f32.xlu0 %v510
      %v512 = vpop.xlane.xlu0 %511
      %v513 = vsel %vm491, %v482, 0.0
      %514 = vadd.xlane.f32.xlu0 %v513
      %v515 = vpop.xlane.xlu0 %514
      %v516 = vsel %vm491, %v483, 0.0
      %517 = vadd.xlane.f32.xlu0 %v516
      %v518 = vpop.xlane.xlu0 %517
      %v519 = vsel %vm491, %v484, 0.0
      %520 = vadd.xlane.f32.xlu0 %v519
      %v521 = vpop.xlane.xlu0 %520
      %v522 = vsel %vm491, %v485, 0.0
      %523 = vadd.xlane.f32.xlu0 %v522
      %v524 = vpop.xlane.xlu0 %523
      %v525 = vsel %vm491, %v486, 0.0
      %526 = vadd.xlane.f32.xlu0 %v525
      %v527 = vpop.xlane.xlu0 %526
      %v528 = vsel %vm491, %v487, 0.0
      %529 = vadd.xlane.f32.xlu0 %v528
      %v530 = vpop.xlane.xlu0 %529
      %v531 = vsel %vm491, %v488, 0.0
      %532 = vadd.xlane.f32.xlu0 %v531
      %v533 = vpop.xlane.xlu0 %532
      %v534 = vsel %vm491, %v489, 0.0
      %535 = vadd.xlane.f32.xlu0 %v534
      %v536 = vpop.xlane.xlu0 %535
      %v537 = vsel %vm491, %v490, 0.0
      %538 = vadd.xlane.f32.xlu0 %v537
      %v539 = vpop.xlane.xlu0 %538
      %v540 = vld [vmem:[#allocation2] sm:$0x1]
      %v542 = vlaneseq
      %v543 = vshrl.u32 %v542, 7
      %v544 = vsub.s32 0, %v543
      %v545 = vrot.slane %v540, %v544
      %v547 = vadd.f32 %v494, %v545
      %v548 = vadd.f32 %v497, %v545
      %v549 = vadd.f32 %v500, %v545
      %v550 = vadd.f32 %v503, %v545
      %v551 = vadd.f32 %v506, %v545
      %v552 = vadd.f32 %v509, %v545
      %v553 = vadd.f32 %v512, %v545
      %v554 = vadd.f32 %v515, %v545
      %v555 = vadd.f32 %v518, %v545
      %v556 = vadd.f32 %v521, %v545
      %v557 = vadd.f32 %v524, %v545
      %v558 = vadd.f32 %v527, %v545
      %v559 = vadd.f32 %v530, %v545
      %v560 = vadd.f32 %v533, %v545
      %v561 = vadd.f32 %v536, %v545
      %v562 = vadd.f32 %v539, %v545
      %vm563 = vcmask 7168
      %564 = vst.msk [vmem:[%s228] sm:$0xff] %vm563, %v547
      %565 = vst.msk [vmem:[%s228 + $0x8] sm:$0xff] %vm563, %v548
      %566 = vst.msk [vmem:[%s228 + $0x10] sm:$0xff] %vm563, %v549
      %567 = vst.msk [vmem:[%s228 + $0x18] sm:$0xff] %vm563, %v550
      %568 = vst.msk [vmem:[%s228 + $0x20] sm:$0xff] %vm563, %v551
      %569 = vst.msk [vmem:[%s228 + $0x28] sm:$0xff] %vm563, %v552
      %570 = vst.msk [vmem:[%s228 + $0x30] sm:$0xff] %vm563, %v553
      %571 = vst.msk [vmem:[%s228 + $0x38] sm:$0xff] %vm563, %v554
      %572 = vst.msk [vmem:[%s228 + $0x40] sm:$0xff] %vm563, %v555
      %573 = vst.msk [vmem:[%s228 + $0x48] sm:$0xff] %vm563, %v556
      %574 = vst.msk [vmem:[%s228 + $0x50] sm:$0xff] %vm563, %v557
      %575 = vst.msk [vmem:[%s228 + $0x58] sm:$0xff] %vm563, %v558
      %576 = vst.msk [vmem:[%s228 + $0x60] sm:$0xff] %vm563, %v559
      %577 = vst.msk [vmem:[%s228 + $0x68] sm:$0xff] %vm563, %v560
      %578 = vst.msk [vmem:[%s228 + $0x70] sm:$0xff] %vm563, %v561
      %579 = vst.msk [vmem:[%s228 + $0x78] sm:$0xff] %vm563, %v562
      %s580 = smul.u32 16, %s18
      %p581 = scmp.lt.s32.totalorder %s580, 31
      %s582 = scalar_select %p581, %s580, 31
      %s583 = smul.addr %s582, 8
      %s584 = scalar_lea.vmem %s5, %s583
      // Predicated region
      $region41: #{deep_classifier_forward.1} parent=39 // pred_check
        %p585 = pneg %p146
      $region42: #{deep_classifier_forward.1} parent=39 // pred_check_branch
        %587 = sbr.rel (%p585) target = $region44
      $region43: #{deep_classifier_forward.1} parent=39 // pred_region
        %s588 = smul.u32 16, %s18
      $region44: #{deep_classifier_forward.1} parent=39 // pred_fallthru
        _
    $region40: #{deep_classifier_forward.1} parent=5 // pred_fallthru
      _
    %p589 = scmp.le.s32.totalorder 2, %s13
    // Predicated region
    $region45: #{deep_classifier_forward.1} parent=5 // pred_check
      %p590 = pneg %p589
    $region46: #{deep_classifier_forward.1} parent=5 // pred_check_branch
      %592 = sbr.rel (%p590) target = $region48
    $region47: #{deep_classifier_forward.1} parent=5 // pred_region
      %s593 = ssub.s32 %s13, 2
      // Predicated region
      $region49: #{deep_classifier_forward.1} parent=47 // pred_check
        %p594 = pneg %p152
      $region50: #{deep_classifier_forward.1} parent=47 // pred_check_branch
        %596 = sbr.rel (%p594) target = $region52
      $region51: #{deep_classifier_forward.1} parent=47 // pred_region
        %s597 = smul.u32 16, %s19
        %p598 = scmp.lt.s32.totalorder %s597, 31
        %s599 = scalar_select %p598, %s597, 31
        %s600 = smul.addr %s599, 8
        %s601 = scalar_lea.vmem %s5, %s600
      $region52: #{deep_classifier_forward.1} parent=47 // pred_fallthru
        _
    $region48: #{deep_classifier_forward.1} parent=5 // pred_fallthru
      _
  $region6: #{deep_classifier_forward.1} parent=0 // loop_footer
    %s17 = sadd.s32 1, %s13
  $region7: #{deep_classifier_forward.1} parent=0 // loop_footer_branch
    %12 = sbr.rel target = $region3
  $region8: #{deep_classifier_forward.1} parent=0 // loop_exit
    _

</llo_original>
